<compile_context>
chip_gen: v6e
topology: v6e:2x2x1
jax: 0.10.0
libtpu: 0.0.40
codegen_flags: <defaults>
</compile_context>

<pallas_src>
import functools

import jax
import jax.numpy as jnp
from jax.experimental import pallas as pl
from jax.experimental.pallas import tpu as pltpu


def _round_up(x, m):
    return ((x + m - 1) // m) * m


# ------------------------- Pallas kernel -------------------------

def mlp_relu3_kernel(x_ref, w1_ref, b1_ref, w2_ref, b2_ref, w3_ref, b3_ref, o_ref):
    """relu(relu(relu(x@W1 + b1)@W2 + b2)@W3 + b3); bf16 MXU, f32 accumulate."""
    x = x_ref[...].astype(jnp.bfloat16)
    h1 = jnp.dot(x, w1_ref[...], preferred_element_type=jnp.float32) + b1_ref[...]
    h1 = jnp.maximum(h1, 0.0).astype(jnp.bfloat16)
    h2 = jnp.dot(h1, w2_ref[...], preferred_element_type=jnp.float32) + b2_ref[...]
    h2 = jnp.maximum(h2, 0.0).astype(jnp.bfloat16)
    h3 = jnp.dot(h2, w3_ref[...], preferred_element_type=jnp.float32) + b3_ref[...]
    o_ref[...] = jnp.maximum(h3, 0.0)   # lane-dense store (O padded to 128*k)


# ------------------------- one-time parameter prep -------------------------

def prepare_params(params):
    """Pre-transpose weights to (in, out), cast to bf16, pad the output dim to
    a multiple of 128 with zeros (ReLU(0 + 0) stays 0, so semantics match).
    Call ONCE at load time, not per forward call."""
    w1, b1 = params["w1"], params["b1"]   # (H, D)
    w2, b2 = params["w2"], params["b2"]   # (D, H)
    w3, b3 = params["w3"], params["b3"]   # (O, H)
    H, D = w1.shape
    O = w3.shape[0]
    assert w2.shape[0] == w3.shape[1], "forward requires input_dimm == hidden_dim"

    o_pad = _round_up(O, 128)
    w3m = jnp.zeros((w3.shape[1], o_pad), jnp.bfloat16).at[:, :O].set(
        w3.T.astype(jnp.bfloat16))
    b3p = jnp.zeros((1, o_pad), jnp.float32).at[:, :O].set(b3.astype(jnp.float32))

    prepared = {
        "w1m": w1.T.astype(jnp.bfloat16),                    # (D, H)
        "b1": b1.astype(jnp.float32).reshape(1, H),
        "w2m": w2.T.astype(jnp.bfloat16),                    # (H, D)
        "b2": b2.astype(jnp.float32).reshape(1, D),
        "w3m": w3m,                                          # (H, O_pad)
        "b3": b3p,                                           # (1, O_pad)
    }
    return prepared, O


# ------------------------- VMEM budgeting -------------------------

def _vmem_bytes(tm, D, H, o_pad, x_itemsize):
    weights = (D * H + H * D + H * o_pad) * 2 + (H + D + o_pad) * 4  # single-buffered
    io = 2 * tm * D * x_itemsize + 2 * tm * o_pad * 4                # double-buffered x / out
    scratch = tm * H * 4 + tm * D * 4                                # f32 intermediates
    return weights + io + scratch


# ------------------------- wrapper -------------------------

def look_ahead_policy(x, prepared, *, out_dim, max_tile_m=512):
    """x: (B, input_dimm) float32. prepared: output of prepare_params.
    Returns (B, out_dim) float32."""
    w1m, b1 = prepared["w1m"], prepared["b1"]
    w2m, b2 = prepared["w2m"], prepared["b2"]
    w3m, b3 = prepared["w3m"], prepared["b3"]

    B, D = x.shape
    H = w1m.shape[1]
    o_pad = w3m.shape[1]
    x_bytes = jnp.dtype(x.dtype).itemsize

    # Row-tile over the batch.  Tiny batches: one full block (latency-bound).
    # Larger batches: >= 2 grid steps (megacore on v7x), capped by max_tile_m
    # and by a VMEM budget that fits v7x's 64 MiB / v5e's raised scoped limit.
    if B <= 128:
        tm = B
    else:
        tm = min(max_tile_m, _round_up(pl.cdiv(B, 2), 8))
        budget = 40 * 1024 * 1024
        while tm > 8 and _vmem_bytes(tm, D, H, o_pad, x_bytes) > budget:
            tm = max(8, _round_up(tm // 2, 8))
    grid = (pl.cdiv(B, tm),)

    vmem_limit = int(min(60 * 1024 * 1024,
                         max(2 * _vmem_bytes(tm, D, H, o_pad, x_bytes),
                             16 * 1024 * 1024)))

    resident = dict(pipeline_mode=pl.Buffered(1))   # weights/biases: 1 buffer

    out = pl.pallas_call(
        mlp_relu3_kernel,
        out_shape=jax.ShapeDtypeStruct((B, o_pad), jnp.float32),
        grid_spec=pltpu.PrefetchScalarGridSpec(
            num_scalar_prefetch=0,
            grid=grid,
            in_specs=[
                pl.BlockSpec((tm, D), lambda i: (i, 0)),                # x row tile
                pl.BlockSpec((D, H), lambda i: (0, 0), **resident),     # W1 (resident)
                pl.BlockSpec((1, H), lambda i: (0, 0), **resident),     # b1
                pl.BlockSpec((H, D), lambda i: (0, 0), **resident),     # W2 (resident)
                pl.BlockSpec((1, D), lambda i: (0, 0), **resident),     # b2
                pl.BlockSpec((H, o_pad), lambda i: (0, 0), **resident), # W3 (resident)
                pl.BlockSpec((1, o_pad), lambda i: (0, 0), **resident), # b3
            ],
            out_specs=pl.BlockSpec((tm, o_pad), lambda i: (i, 0)),
        ),
        compiler_params=pltpu.CompilerParams(
            dimension_semantics=("parallel",),
            vmem_limit_bytes=vmem_limit),
    )(x, w1m, b1, w2m, b2, w3m, b3)

    return out[:, :out_dim]


# ------------------------- pure-JAX reference -------------------------

def reference_forward(x, params):
    h1 = jnp.maximum(x @ params["w1"].T + params["b1"], 0.0)
    h2 = jnp.maximum(h1 @ params["w2"].T + params["b2"], 0.0)
    return jnp.maximum(h2 @ params["w3"].T + params["b3"], 0.0)


# ------------------------- main -------------------------

if __name__ == "__main__":
    # Small shapes consistent with the module (input_dimm must equal hidden_dim
    # for the original forward to be well-typed).
    batch = 2
    input_dimm = 32
    hidden_dim = 32
    output_dim = 8

    key = jax.random.PRNGKey(0)
    k_x, k_w1, k_b1, k_w2, k_b2, k_w3, k_b3 = jax.random.split(key, 7)

    x = jax.random.normal(k_x, (batch, input_dimm), dtype=jnp.float32)

    params = {
        # fc1: Linear(input_dimm, hidden_dim)  -> weight (out, in)
        "w1": 0.1 * jax.random.normal(k_w1, (hidden_dim, input_dimm), dtype=jnp.float32),
        "b1": 0.01 * jax.random.normal(k_b1, (hidden_dim,), dtype=jnp.float32),
        # fc2: Linear(hidden_dim, input_dimm)
        "w2": 0.1 * jax.random.normal(k_w2, (input_dimm, hidden_dim), dtype=jnp.float32),
        "b2": 0.01 * jax.random.normal(k_b2, (input_dimm,), dtype=jnp.float32),
        # fc3: Linear(hidden_dim, output_dim)
        "w3": 0.1 * jax.random.normal(k_w3, (output_dim, hidden_dim), dtype=jnp.float32),
        "b3": 0.01 * jax.random.normal(k_b3, (output_dim,), dtype=jnp.float32),
    }

    # One-time weight prep (pre-transposed bf16 weights, padded output dim).
    prepared, out_dim = prepare_params(params)
    prepared = jax.tree_util.tree_map(jax.block_until_ready, prepared)

    fwd = jax.jit(functools.partial(look_ahead_policy, out_dim=out_dim))
    out = fwd(x, prepared)
    out = jax.block_until_ready(out)

    ref = reference_forward(x, params)
    assert out.shape == (batch, output_dim), out.shape
    assert jnp.all(out >= 0.0)
    # bf16 MXU inputs => bf16-class error; still tight at these magnitudes.
    assert jnp.allclose(out, ref, atol=2e-2, rtol=2e-2), float(jnp.max(jnp.abs(out - ref)))

    print("KERNEL_OK")
</pallas_src>

<mosaic_0001>
module attributes {stable_mosaic.version = 11 : i64} {
  func.func @mlp_relu3_kernel(%arg0: i32, %arg1: memref<2x32xf32, #tpu.memory_space<vmem>>, %arg2: memref<32x32xbf16, #tpu.memory_space<vmem>>, %arg3: memref<1x32xf32, #tpu.memory_space<vmem>>, %arg4: memref<32x32xbf16, #tpu.memory_space<vmem>>, %arg5: memref<1x32xf32, #tpu.memory_space<vmem>>, %arg6: memref<32x128xbf16, #tpu.memory_space<vmem>>, %arg7: memref<1x128xf32, #tpu.memory_space<vmem>>, %arg8: memref<2x128xf32, #tpu.memory_space<vmem>>) attributes {dimension_semantics = [#tpu.dimension_semantics<parallel>], iteration_bounds = array<i64: 1>, scalar_prefetch = 0 : i64, scratch_operands = 0 : i64, tpu.core_type = #tpu.core_type<tc>, window_params = [{transform_indices = @transform_0, window_bounds = array<i64: 2, 32>}, {pipeline_mode = #tpu.pipeline_mode<synchronous>, transform_indices = @transform_1, window_bounds = array<i64: 32, 32>}, {pipeline_mode = #tpu.pipeline_mode<synchronous>, transform_indices = @transform_2, window_bounds = array<i64: 1, 32>}, {pipeline_mode = #tpu.pipeline_mode<synchronous>, transform_indices = @transform_3, window_bounds = array<i64: 32, 32>}, {pipeline_mode = #tpu.pipeline_mode<synchronous>, transform_indices = @transform_4, window_bounds = array<i64: 1, 32>}, {pipeline_mode = #tpu.pipeline_mode<synchronous>, transform_indices = @transform_5, window_bounds = array<i64: 32, 128>}, {pipeline_mode = #tpu.pipeline_mode<synchronous>, transform_indices = @transform_6, window_bounds = array<i64: 1, 128>}, {transform_indices = @transform_7, window_bounds = array<i64: 2, 128>}]} {
    %c0 = arith.constant 0 : index
    %c0_0 = arith.constant 0 : index
    %0 = vector.load %arg1[%c0, %c0_0] : memref<2x32xf32, #tpu.memory_space<vmem>>, vector<2x32xf32>
    %1 = arith.truncf %0 : vector<2x32xf32> to vector<2x32xbf16>
    %c0_1 = arith.constant 0 : index
    %c0_2 = arith.constant 0 : index
    %2 = vector.load %arg2[%c0_1, %c0_2] : memref<32x32xbf16, #tpu.memory_space<vmem>>, vector<32x32xbf16>
    %cst = arith.constant dense<0.000000e+00> : vector<2x32xf32>
    %3 = tpu.matmul %1, %2, %cst {dimension_numbers = #tpu.dot_dimension_numbers<[1], [0], [0], [1], [0, 0, 1, 1], [], []>} : vector<2x32xbf16>, vector<32x32xbf16>, vector<2x32xf32> -> vector<2x32xf32>
    %c0_3 = arith.constant 0 : index
    %c0_4 = arith.constant 0 : index
    %4 = vector.load %arg3[%c0_3, %c0_4] : memref<1x32xf32, #tpu.memory_space<vmem>>, vector<1x32xf32>
    %5 = vector.broadcast %4 : vector<1x32xf32> to vector<2x32xf32>
    %6 = arith.addf %3, %5 : vector<2x32xf32>
    %cst_5 = arith.constant 0.000000e+00 : f32
    %7 = vector.broadcast %cst_5 : f32 to vector<2x32xf32>
    %8 = arith.maximumf %6, %7 : vector<2x32xf32>
    %9 = arith.truncf %8 : vector<2x32xf32> to vector<2x32xbf16>
    %c0_6 = arith.constant 0 : index
    %c0_7 = arith.constant 0 : index
    %10 = vector.load %arg4[%c0_6, %c0_7] : memref<32x32xbf16, #tpu.memory_space<vmem>>, vector<32x32xbf16>
    %cst_8 = arith.constant dense<0.000000e+00> : vector<2x32xf32>
    %11 = tpu.matmul %9, %10, %cst_8 {dimension_numbers = #tpu.dot_dimension_numbers<[1], [0], [0], [1], [0, 0, 1, 1], [], []>} : vector<2x32xbf16>, vector<32x32xbf16>, vector<2x32xf32> -> vector<2x32xf32>
    %c0_9 = arith.constant 0 : index
    %c0_10 = arith.constant 0 : index
    %12 = vector.load %arg5[%c0_9, %c0_10] : memref<1x32xf32, #tpu.memory_space<vmem>>, vector<1x32xf32>
    %13 = vector.broadcast %12 : vector<1x32xf32> to vector<2x32xf32>
    %14 = arith.addf %11, %13 : vector<2x32xf32>
    %cst_11 = arith.constant 0.000000e+00 : f32
    %15 = vector.broadcast %cst_11 : f32 to vector<2x32xf32>
    %16 = arith.maximumf %14, %15 : vector<2x32xf32>
    %17 = arith.truncf %16 : vector<2x32xf32> to vector<2x32xbf16>
    %c0_12 = arith.constant 0 : index
    %c0_13 = arith.constant 0 : index
    %18 = vector.load %arg6[%c0_12, %c0_13] : memref<32x128xbf16, #tpu.memory_space<vmem>>, vector<32x128xbf16>
    %cst_14 = arith.constant dense<0.000000e+00> : vector<2x128xf32>
    %19 = tpu.matmul %17, %18, %cst_14 {dimension_numbers = #tpu.dot_dimension_numbers<[1], [0], [0], [1], [0, 0, 1, 1], [], []>} : vector<2x32xbf16>, vector<32x128xbf16>, vector<2x128xf32> -> vector<2x128xf32>
    %c0_15 = arith.constant 0 : index
    %c0_16 = arith.constant 0 : index
    %20 = vector.load %arg7[%c0_15, %c0_16] : memref<1x128xf32, #tpu.memory_space<vmem>>, vector<1x128xf32>
    %21 = vector.broadcast %20 : vector<1x128xf32> to vector<2x128xf32>
    %22 = arith.addf %19, %21 : vector<2x128xf32>
    %cst_17 = arith.constant 0.000000e+00 : f32
    %23 = vector.broadcast %cst_17 : f32 to vector<2x128xf32>
    %24 = arith.maximumf %22, %23 : vector<2x128xf32>
    %c0_18 = arith.constant 0 : index
    %c0_19 = arith.constant 0 : index
    %25 = vector.load %arg8[%c0_18, %c0_19] : memref<2x128xf32, #tpu.memory_space<vmem>>, vector<2x128xf32>
    tpu.vector_store %arg8[%c0_18, %c0_19], %24 {strides = array<i32>} : memref<2x128xf32, #tpu.memory_space<vmem>>, vector<2x128xf32>,
    return
  }
  func.func @transform_0(%arg0: i32) -> (i32, i32) {
    %c0_i32 = arith.constant 0 : i32
    %c0_i32_0 = arith.constant 0 : i32
    return %arg0, %c0_i32 : i32, i32
  }
  func.func @transform_1(%arg0: i32) -> (i32, i32) {
    %c0_i32 = arith.constant 0 : i32
    %c0_i32_0 = arith.constant 0 : i32
    %c0_i32_1 = arith.constant 0 : i32
    return %c0_i32, %c0_i32_0 : i32, i32
  }
  func.func @transform_2(%arg0: i32) -> (i32, i32) {
    %c0_i32 = arith.constant 0 : i32
    %c0_i32_0 = arith.constant 0 : i32
    %c0_i32_1 = arith.constant 0 : i32
    return %c0_i32, %c0_i32_0 : i32, i32
  }
  func.func @transform_3(%arg0: i32) -> (i32, i32) {
    %c0_i32 = arith.constant 0 : i32
    %c0_i32_0 = arith.constant 0 : i32
    %c0_i32_1 = arith.constant 0 : i32
    return %c0_i32, %c0_i32_0 : i32, i32
  }
  func.func @transform_4(%arg0: i32) -> (i32, i32) {
    %c0_i32 = arith.constant 0 : i32
    %c0_i32_0 = arith.constant 0 : i32
    %c0_i32_1 = arith.constant 0 : i32
    return %c0_i32, %c0_i32_0 : i32, i32
  }
  func.func @transform_5(%arg0: i32) -> (i32, i32) {
    %c0_i32 = arith.constant 0 : i32
    %c0_i32_0 = arith.constant 0 : i32
    %c0_i32_1 = arith.constant 0 : i32
    return %c0_i32, %c0_i32_0 : i32, i32
  }
  func.func @transform_6(%arg0: i32) -> (i32, i32) {
    %c0_i32 = arith.constant 0 : i32
    %c0_i32_0 = arith.constant 0 : i32
    %c0_i32_1 = arith.constant 0 : i32
    return %c0_i32, %c0_i32_0 : i32, i32
  }
  func.func @transform_7(%arg0: i32) -> (i32, i32) {
    %c0_i32 = arith.constant 0 : i32
    %c0_i32_0 = arith.constant 0 : i32
    return %arg0, %c0_i32 : i32, i32
  }
}

</mosaic_0001>

<llo_original>
// kernel: look_ahead_policy.1
$region0: #{look_ahead_policy.1}
  #allocation0 [shape = 'u32[]', space=smem, size = 0x4, offset = 0x4, fixed_abs, tag = 'smem constant byte address 0x4 - core index']
  #allocation1 [shape = 'u32[144,128]{1,0:T(1,128)}', space=vmem, size = 0x12000, scoped, tag = 'internal scratch']
  %s0 = inlined_call_operand.hbm [shape: f32[2,32], index: 0, kind: input, shape index: {}]
  %s1 = inlined_call_operand.hbm [shape: bf16[32,32], index: 1, kind: input, shape index: {}]
  %s2 = inlined_call_operand.vmem [shape: f32[1,32], index: 2, kind: input, shape index: {}]
  %s3 = inlined_call_operand.hbm [shape: bf16[32,32], index: 3, kind: input, shape index: {}]
  %s4 = inlined_call_operand.vmem [shape: f32[1,32], index: 4, kind: input, shape index: {}]
  %s5 = inlined_call_operand.hbm [shape: bf16[32,128], index: 5, kind: input, shape index: {}]
  %s6 = inlined_call_operand.vmem [shape: f32[1,128], index: 6, kind: input, shape index: {}]
  %s7 = inlined_call_operand.hbm [shape: f32[2,128], index: 7, kind: output, shape index: {}]
  %s8 = sld [smem:[#allocation0]]
  $region54: #{look_ahead_policy.1} parent=0
    _
  %s10 = ssub.s32 1, %s8
  %s11 = scalar_select 0, %s10, %s8
  $region1: #{look_ahead_policy.1} parent=0
    #allocation2 [shape = 'u8[1024]{0}', space=vmem, size = 0x400, scoped, tag = 'input window, operand 0, single buffered']
    #allocation3 [shape = 's32[1]{0}', space=sflag, size = 0x4, scoped, tag = 'scoped memory for look_ahead_policy.1']
    #allocation4 [shape = 's32[1]{0}', space=sflag, size = 0x4, scoped, tag = 'scoped memory for look_ahead_policy.1']
    #allocation5 [shape = 'u8[8192]{0}', space=vmem, size = 0x2000, scoped, tag = 'input window, operand 1, single buffered']
    #allocation6 [shape = 's32[1]{0}', space=sflag, size = 0x4, scoped, tag = 'scoped memory for look_ahead_policy.1']
    #allocation7 [shape = 'u8[8192]{0}', space=vmem, size = 0x2000, scoped, tag = 'input window, operand 3, single buffered']
    #allocation8 [shape = 'u8[8192]{0}', space=vmem, size = 0x2000, scoped, tag = 'input window, operand 5, single buffered']
    #allocation9 [shape = 's32[1]{0}', space=sflag, size = 0x4, scoped, tag = 'scoped memory for look_ahead_policy.1']
    #allocation10 [shape = 'u8[1024]{0}', space=vmem, size = 0x400, scoped, tag = 'output window, operand 0, single buffered']
    %12 = vsyncpa [#allocation3], 0
    %13 = vsyncpa [#allocation6], 0
    %14 = vsyncpa [#allocation9], 0
    %15 = vsyncpa [#allocation4], 0
    // Predicated region
    $region2: #{look_ahead_policy.1} parent=1 // pred_check
      _
    $region3: #{look_ahead_policy.1} parent=1 // pred_check_branch
      %17 = sbr.rel (0) target = $region5
    $region4: #{look_ahead_policy.1} parent=1 // pred_region
      %s19 = ssub.s32 32, 32
      %20 = vsyncadd [#allocation3], %s19
      %s22 = sshll.u32 [#allocation2], 4
      %s23 = int_to_ptr.vmem [resolvable:$true] %s22
      %25 = dma.hbm_to_vmem [thread:$0]  %s0, 32, %s23, [#allocation3]
    $region5: #{look_ahead_policy.1} parent=1 // pred_fallthru
      _
    // Predicated region
    $region6: #{look_ahead_policy.1} parent=1 // pred_check
      _
    $region7: #{look_ahead_policy.1} parent=1 // pred_check_branch
      %27 = sbr.rel (0) target = $region9
    $region8: #{look_ahead_policy.1} parent=1 // pred_region
      %s29 = ssub.s32 256, 256
      %30 = vsyncadd [#allocation6], %s29
      %s31 = sshll.u32 [#allocation5], 4
      %s32 = int_to_ptr.vmem [resolvable:$true] %s31
      %37 = dma.hbm_to_vmem [thread:$0]  %s1, 256, %s32, [#allocation6], 64, 64, 4
    $region9: #{look_ahead_policy.1} parent=1 // pred_fallthru
      _
    // Predicated region
    $region10: #{look_ahead_policy.1} parent=1 // pred_check
      _
    $region11: #{look_ahead_policy.1} parent=1 // pred_check_branch
      %39 = sbr.rel (0) target = $region13
    $region12: #{look_ahead_policy.1} parent=1 // pred_region
      _
    $region13: #{look_ahead_policy.1} parent=1 // pred_fallthru
      _
    // Predicated region
    $region14: #{look_ahead_policy.1} parent=1 // pred_check
      _
    $region15: #{look_ahead_policy.1} parent=1 // pred_check_branch
      %41 = sbr.rel (0) target = $region17
    $region16: #{look_ahead_policy.1} parent=1 // pred_region
      %s43 = ssub.s32 256, 256
      %44 = vsyncadd [#allocation6], %s43
      %s45 = sshll.u32 [#allocation7], 4
      %s46 = int_to_ptr.vmem [resolvable:$true] %s45
      %51 = dma.hbm_to_vmem [thread:$0]  %s3, 256, %s46, [#allocation6], 64, 64, 4
    $region17: #{look_ahead_policy.1} parent=1 // pred_fallthru
      _
    // Predicated region
    $region18: #{look_ahead_policy.1} parent=1 // pred_check
      _
    $region19: #{look_ahead_policy.1} parent=1 // pred_check_branch
      %53 = sbr.rel (0) target = $region21
    $region20: #{look_ahead_policy.1} parent=1 // pred_region
      _
    $region21: #{look_ahead_policy.1} parent=1 // pred_fallthru
      _
    // Predicated region
    $region22: #{look_ahead_policy.1} parent=1 // pred_check
      _
    $region23: #{look_ahead_policy.1} parent=1 // pred_check_branch
      %55 = sbr.rel (0) target = $region25
    $region24: #{look_ahead_policy.1} parent=1 // pred_region
      %s57 = ssub.s32 256, 256
      %58 = vsyncadd [#allocation9], %s57
      %s59 = sshll.u32 [#allocation8], 4
      %s60 = int_to_ptr.vmem [resolvable:$true] %s59
      %65 = dma.hbm_to_vmem [thread:$0]  %s5, 256, %s60, [#allocation9], 64, 64, 4
    $region25: #{look_ahead_policy.1} parent=1 // pred_fallthru
      _
    // Predicated region
    $region26: #{look_ahead_policy.1} parent=1 // pred_check
      _
    $region27: #{look_ahead_policy.1} parent=1 // pred_check_branch
      %67 = sbr.rel (0) target = $region29
    $region28: #{look_ahead_policy.1} parent=1 // pred_region
      _
    $region29: #{look_ahead_policy.1} parent=1 // pred_fallthru
      _
    // Predicated region
    $region30: #{look_ahead_policy.1} parent=1 // pred_check
      _
    $region31: #{look_ahead_policy.1} parent=1 // pred_check_branch
      %69 = sbr.rel (0) target = $region33
    $region32: #{look_ahead_policy.1} parent=1 // pred_region
      %70 = dma.done [#allocation3], 32
    $region33: #{look_ahead_policy.1} parent=1 // pred_fallthru
      _
    // Predicated region
    $region34: #{look_ahead_policy.1} parent=1 // pred_check
      _
    $region35: #{look_ahead_policy.1} parent=1 // pred_check_branch
      %72 = sbr.rel (0) target = $region37
    $region36: #{look_ahead_policy.1} parent=1 // pred_region
      %73 = dma.done [#allocation6], 256
    $region37: #{look_ahead_policy.1} parent=1 // pred_fallthru
      _
    // Predicated region
    $region38: #{look_ahead_policy.1} parent=1 // pred_check
      _
    $region39: #{look_ahead_policy.1} parent=1 // pred_check_branch
      %75 = sbr.rel (0) target = $region41
    $region40: #{look_ahead_policy.1} parent=1 // pred_region
      %76 = dma.done [#allocation6], 256
    $region41: #{look_ahead_policy.1} parent=1 // pred_fallthru
      _
    // Predicated region
    $region42: #{look_ahead_policy.1} parent=1 // pred_check
      _
    $region43: #{look_ahead_policy.1} parent=1 // pred_check_branch
      %78 = sbr.rel (0) target = $region45
    $region44: #{look_ahead_policy.1} parent=1 // pred_region
      %79 = dma.done [#allocation9], 256
    $region45: #{look_ahead_policy.1} parent=1 // pred_fallthru
      _
    %v81 = vld [vmem:[#allocation2] sm:$0x3]
    %v82 = vpack.c.bf16 %v81, %v81
    %v83 = vld [vmem:[#allocation5] sm:$0xf]
    %v84 = vld [vmem:[#allocation5 + $0x4] sm:$0xf]
    %v85 = vld [vmem:[#allocation5 + $0x8] sm:$0xf]
    %v86 = vld [vmem:[#allocation5 + $0xc] sm:$0xf]
    %v87 = vld [vmem:[%s2] sm:$0x1]
    %v89 = vlaneseq
    %v90 = vshrl.u32 %v89, 7
    %v91 = vsub.s32 0, %v90
    %v92 = vrot.slane %v87, %v91
    %v98 = vunpack.c.l.b16 %v83
    %v99 = vunpack.c.l.b16 %v84
    %v100 = vunpack.c.l.b16 %v85
    %v101 = vunpack.c.l.b16 %v86
    %v102 = vpack.c.b16 %v99, %v98
    %v103 = vpack.c.b16 %v101, %v100
    %vm106 = vcmask 261120
    %v108 = vsel %vm106, %v82, 0
    %110 = vmatprep.subr.bf16.mxu0 0
    %111 = vmatpush1.bf16.msra.mxu0 0
    %112 = vmatprep.subr.bf16.mxu0 0
    %113 = vmatpush1.bf16.msra.mxu0 0
    %114 = vmatprep.subr.bf16.mxu0 0
    %115 = vmatpush1.bf16.msra.mxu0 0
    %116 = vmatprep.subr.bf16.mxu0 0
    %117 = vmatpush1.bf16.msra.mxu0 0
    %118 = vmatprep.subr.bf16.mxu0 0
    %119 = vmatpush1.bf16.msra.mxu0 0
    %120 = vmatprep.subr.bf16.mxu0 0
    %121 = vmatpush1.bf16.msra.mxu0 0
    %122 = vmatprep.subr.bf16.mxu0 0
    %123 = vmatpush1.bf16.msra.mxu0 %v103
    %124 = vmatprep.subr.bf16.mxu0 0
    %125 = vmatpush1.bf16.msra.mxu0 %v102
    %126 = vmatprep.subr.bf16.mxu0 0
    %127 = vmatpush2.bf16.msra.mxu0 0
    %128 = vmatprep.subr.bf16.mxu0 0
    %129 = vmatpush2.bf16.msra.mxu0 0
    %130 = vmatprep.subr.bf16.mxu0 0
    %131 = vmatpush2.bf16.msra.mxu0 0
    %132 = vmatprep.subr.bf16.mxu0 0
    %133 = vmatpush2.bf16.msra.mxu0 0
    %134 = vmatprep.subr.bf16.mxu0 0
    %135 = vmatpush2.bf16.msra.mxu0 0
    %136 = vmatprep.subr.bf16.mxu0 0
    %137 = vmatpush2.bf16.msra.mxu0 0
    %138 = vmatprep.subr.bf16.mxu0 0
    %139 = vmatpush2.bf16.msra.mxu0 0
    %140 = vmatprep.subr.bf16.mxu0 0
    %141 = vmatpush2.bf16.msra.mxu0 0
    %142 = vmatprep.mubr.bf16.mxu0 0
    %143 = vmatmul.mubr.bf16.gmra.mxu0 %v108
    %v144 = vpop.f32.mrf.mxu0
    %v145 = vadd.f32 %v92, %v144
    %v146 = vpop.f32.mrf.mxu0
    %v147 = vpop.f32.mrf.mxu0
    %v148 = vpop.f32.mrf.mxu0
    %149 = vdwg.mxu0
    %v150 = vmax.f32 %v145, 0.0
    %v151 = vpack.c.bf16 %v150, %v150
    %v152 = vld [vmem:[#allocation7] sm:$0xf]
    %v153 = vld [vmem:[#allocation7 + $0x4] sm:$0xf]
    %v154 = vld [vmem:[#allocation7 + $0x8] sm:$0xf]
    %v155 = vld [vmem:[#allocation7 + $0xc] sm:$0xf]
    %v156 = vld [vmem:[%s4] sm:$0x1]
    %v158 = vlaneseq
    %v159 = vshrl.u32 %v158, 7
    %v160 = vsub.s32 0, %v159
    %v161 = vrot.slane %v156, %v160
    %v167 = vunpack.c.l.b16 %v152
    %v168 = vunpack.c.l.b16 %v153
    %v169 = vunpack.c.l.b16 %v154
    %v170 = vunpack.c.l.b16 %v155
    %v171 = vpack.c.b16 %v168, %v167
    %v172 = vpack.c.b16 %v170, %v169
    %v176 = vsel %vm106, %v151, 0
    %178 = vmatprep.subr.bf16.mxu0 0
    %179 = vmatpush1.bf16.msra.mxu0 0
    %180 = vmatprep.subr.bf16.mxu0 0
    %181 = vmatpush1.bf16.msra.mxu0 0
    %182 = vmatprep.subr.bf16.mxu0 0
    %183 = vmatpush1.bf16.msra.mxu0 0
    %184 = vmatprep.subr.bf16.mxu0 0
    %185 = vmatpush1.bf16.msra.mxu0 0
    %186 = vmatprep.subr.bf16.mxu0 0
    %187 = vmatpush1.bf16.msra.mxu0 0
    %188 = vmatprep.subr.bf16.mxu0 0
    %189 = vmatpush1.bf16.msra.mxu0 0
    %190 = vmatprep.subr.bf16.mxu0 0
    %191 = vmatpush1.bf16.msra.mxu0 %v172
    %192 = vmatprep.subr.bf16.mxu0 0
    %193 = vmatpush1.bf16.msra.mxu0 %v171
    %194 = vmatprep.subr.bf16.mxu0 0
    %195 = vmatpush2.bf16.msra.mxu0 0
    %196 = vmatprep.subr.bf16.mxu0 0
    %197 = vmatpush2.bf16.msra.mxu0 0
    %198 = vmatprep.subr.bf16.mxu0 0
    %199 = vmatpush2.bf16.msra.mxu0 0
    %200 = vmatprep.subr.bf16.mxu0 0
    %201 = vmatpush2.bf16.msra.mxu0 0
    %202 = vmatprep.subr.bf16.mxu0 0
    %203 = vmatpush2.bf16.msra.mxu0 0
    %204 = vmatprep.subr.bf16.mxu0 0
    %205 = vmatpush2.bf16.msra.mxu0 0
    %206 = vmatprep.subr.bf16.mxu0 0
    %207 = vmatpush2.bf16.msra.mxu0 0
    %208 = vmatprep.subr.bf16.mxu0 0
    %209 = vmatpush2.bf16.msra.mxu0 0
    %210 = vmatprep.mubr.bf16.mxu0 0
    %211 = vmatmul.mubr.bf16.gmra.mxu0 %v176
    %v212 = vpop.f32.mrf.mxu0
    %v213 = vadd.f32 %v161, %v212
    %v214 = vpop.f32.mrf.mxu0
    %v215 = vpop.f32.mrf.mxu0
    %v216 = vpop.f32.mrf.mxu0
    %217 = vdwg.mxu0
    %v218 = vmax.f32 %v213, 0.0
    %v219 = vpack.c.bf16 %v218, %v218
    %v220 = vld [vmem:[#allocation8] sm:$0xf]
    %v221 = vld [vmem:[#allocation8 + $0x4] sm:$0xf]
    %v222 = vld [vmem:[#allocation8 + $0x8] sm:$0xf]
    %v223 = vld [vmem:[#allocation8 + $0xc] sm:$0xf]
    %v224 = vld [vmem:[%s6] sm:$0x1]
    %v226 = vlaneseq
    %v227 = vshrl.u32 %v226, 7
    %v228 = vsub.s32 0, %v227
    %v229 = vrot.slane %v224, %v228
    %v235 = vunpack.c.l.b16 %v220
    %v236 = vunpack.c.l.b16 %v221
    %v237 = vunpack.c.l.b16 %v222
    %v238 = vunpack.c.l.b16 %v223
    %v239 = vpack.c.b16 %v236, %v235
    %v240 = vpack.c.b16 %v238, %v237
    %v244 = vsel %vm106, %v219, 0
    %246 = vmatprep.subr.bf16.mxu0 0
    %247 = vmatpush1.bf16.msra.mxu0 0
    %248 = vmatprep.subr.bf16.mxu0 0
    %249 = vmatpush1.bf16.msra.mxu0 0
    %250 = vmatprep.subr.bf16.mxu0 0
    %251 = vmatpush1.bf16.msra.mxu0 0
    %252 = vmatprep.subr.bf16.mxu0 0
    %253 = vmatpush1.bf16.msra.mxu0 0
    %254 = vmatprep.subr.bf16.mxu0 0
    %255 = vmatpush1.bf16.msra.mxu0 0
    %256 = vmatprep.subr.bf16.mxu0 0
    %257 = vmatpush1.bf16.msra.mxu0 0
    %258 = vmatprep.subr.bf16.mxu0 0
    %259 = vmatpush1.bf16.msra.mxu0 %v240
    %260 = vmatprep.subr.bf16.mxu0 0
    %261 = vmatpush1.bf16.msra.mxu0 %v239
    %262 = vmatprep.subr.bf16.mxu0 0
    %263 = vmatpush2.bf16.msra.mxu0 0
    %264 = vmatprep.subr.bf16.mxu0 0
    %265 = vmatpush2.bf16.msra.mxu0 0
    %266 = vmatprep.subr.bf16.mxu0 0
    %267 = vmatpush2.bf16.msra.mxu0 0
    %268 = vmatprep.subr.bf16.mxu0 0
    %269 = vmatpush2.bf16.msra.mxu0 0
    %270 = vmatprep.subr.bf16.mxu0 0
    %271 = vmatpush2.bf16.msra.mxu0 0
    %272 = vmatprep.subr.bf16.mxu0 0
    %273 = vmatpush2.bf16.msra.mxu0 0
    %274 = vmatprep.subr.bf16.mxu0 0
    %275 = vmatpush2.bf16.msra.mxu0 0
    %276 = vmatprep.subr.bf16.mxu0 0
    %277 = vmatpush2.bf16.msra.mxu0 0
    %278 = vmatprep.mubr.bf16.mxu0 0
    %279 = vmatmul.mubr.bf16.gmra.mxu0 %v244
    %v280 = vpop.f32.mrf.mxu0
    %v281 = vadd.f32 %v229, %v280
    %v282 = vpop.f32.mrf.mxu0
    %v283 = vpop.f32.mrf.mxu0
    %v284 = vpop.f32.mrf.mxu0
    %285 = vdwg.mxu0
    %v286 = vmax.f32 %v281, 0.0
    %287 = vst [vmem:[#allocation10] sm:$0x3] %v286
    // Predicated region
    $region46: #{look_ahead_policy.1} parent=1 // pred_check
      _
    $region47: #{look_ahead_policy.1} parent=1 // pred_check_branch
      %289 = sbr.rel (0) target = $region49
    $region48: #{look_ahead_policy.1} parent=1 // pred_region
      %s291 = ssub.s32 32, 32
      %292 = vsyncadd [#allocation4], %s291
      %s294 = sshll.u32 [#allocation10], 4
      %s295 = int_to_ptr.vmem [resolvable:$true] %s294
      %297 = dma.vmem_to_hbm [thread:$0]  %s295, 32, %s7, [#allocation4]
    $region49: #{look_ahead_policy.1} parent=1 // pred_fallthru
      _
    // Predicated region
    $region50: #{look_ahead_policy.1} parent=1 // pred_check
      _
    $region51: #{look_ahead_policy.1} parent=1 // pred_check_branch
      %299 = sbr.rel (0) target = $region53
    $region52: #{look_ahead_policy.1} parent=1 // pred_region
      %300 = dma.done [#allocation4], 32
    $region53: #{look_ahead_policy.1} parent=1 // pred_fallthru
      _
    %301 = vsyncpa [#allocation3], 1
    %302 = vsyncpa [#allocation6], 1
    %303 = vsyncpa [#allocation9], 1
    %304 = vsyncpa [#allocation4], 1

</llo_original>
